<compile_context>
chip_gen: v7x
topology: tpu7x:2x2x1
jax: 0.10.0
libtpu: 0.0.40
codegen_flags: <defaults>
</compile_context>

<pallas_src>
import math

import jax
import jax.numpy as jnp
from jax.experimental import pallas as pl
from jax.experimental.pallas import tpu as pltpu


def _bernoulli_kernel(logits_ref, value_ref, reduce_ref, probs_ref, logprob_ref):
    """Fused sigmoid + Independent-Bernoulli log_prob for one row tile."""
    l = logits_ref[...].astype(jnp.float32)
    v = value_ref[...].astype(jnp.float32)

    # One EUP exp per element, reused for both sigmoid and softplus.
    e = jnp.exp(-jnp.abs(l))                  # exp(-|l|) in (0, 1], never overflows
    r = 1.0 / (1.0 + e)                       # exact reciprocal keeps 1e-5 accuracy
    probs = jnp.where(l >= 0.0, r, e * r)     # numerically stable sigmoid(l)
    probs_ref[...] = probs.astype(probs_ref.dtype)

    # softplus(l) = max(l, 0) + log1p(exp(-|l|)); per-element Bernoulli log-prob:
    #   v*log(sigmoid(l)) + (1-v)*log(sigmoid(-l)) == v*l - softplus(l)
    lp = v * l - (jnp.maximum(l, 0.0) + jnp.log1p(e))

    # Independent(reinterpreted_batch_ndims=num_channels): each packed row holds
    # G batch rows of E event elements; reduce every E-wide lane segment via a
    # matmul with the (G*E, G) block-diagonal ones matrix (MXU, not XLU).
    logprob_ref[...] = jnp.dot(
        lp,
        reduce_ref[...],
        preferred_element_type=jnp.float32,
        precision=jax.lax.Precision.HIGHEST,
    ).astype(logprob_ref.dtype)


def _choose_packing(M, E):
    """Pick G so the packed lane width G*E is a multiple of 128 (lane-dense)."""
    if E % 128 == 0:
        return 1
    g = 128 // math.gcd(E, 128)
    if M % g == 0 and g * E <= 4096:
        return g
    return 1


def _choose_tile_rows(R, row_bytes, target_bytes=2 * 1024 * 1024):
    """~2 MiB f32 input blocks; keep >=2 grid steps so v7x uses both TCs."""
    if R <= 8:
        return max(R, 1)
    tm = min(R, max(8, target_bytes // max(row_bytes, 1)))
    tm = max(8, (tm // 8) * 8)
    if tm >= R:  # would collapse to a single grid step -> split for 2 TCs
        tm = max(8, ((R // 2) // 8) * 8)
    return tm


def bernoulli_activation(logits, value, num_channels=1):
    """Returns (probs, log_prob) of Independent(Bernoulli(logits), num_channels).

    probs has the same shape as `logits`; log_prob has shape
    logits.shape[:-num_channels] (event dims reduced), matching
    dist.log_prob(value) in PyTorch.
    """
    assert logits.shape == value.shape
    batch_shape = logits.shape[:-num_channels]
    event_shape = logits.shape[-num_channels:]
    M = math.prod(batch_shape) if batch_shape else 1
    E = math.prod(event_shape) if event_shape else 1

    G = _choose_packing(M, E)      # batch rows packed per lane-dense row
    R = M // G                     # packed row count
    L = G * E                      # packed lane width (multiple of 128 when G>1)

    l2d = logits.reshape(R, L)     # free contiguous reshape (lane-dense layout)
    v2d = value.reshape(R, L)
    # (L, G) block-diagonal ones: column g sums lanes [g*E, (g+1)*E).
    reduce_mat = jnp.repeat(jnp.eye(G, dtype=jnp.float32), E, axis=0)

    tm = _choose_tile_rows(R, L * 4)
    grid = (pl.cdiv(R, tm),)

    elem = M * E
    itemsize = jnp.dtype(logits.dtype).itemsize
    cost = pl.CostEstimate(
        flops=int(10 * elem + 2 * elem * G),
        transcendentals=int(2 * elem),
        bytes_accessed=int(3 * elem * itemsize + 4 * M + 4 * L * G),
    )

    probs2d, logprob2d = pl.pallas_call(
        _bernoulli_kernel,
        out_shape=(
            jax.ShapeDtypeStruct((R, L), logits.dtype),
            jax.ShapeDtypeStruct((R, G), jnp.float32),
        ),
        grid_spec=pltpu.PrefetchScalarGridSpec(
            num_scalar_prefetch=0,
            grid=grid,
            in_specs=[
                pl.BlockSpec((tm, L), lambda i: (i, 0)),
                pl.BlockSpec((tm, L), lambda i: (i, 0)),
                pl.BlockSpec((L, G), lambda i: (0, 0)),   # tiny, same block every step
            ],
            out_specs=[
                pl.BlockSpec((tm, L), lambda i: (i, 0)),
                pl.BlockSpec((tm, G), lambda i: (i, 0)),
            ],
        ),
        compiler_params=pltpu.CompilerParams(
            dimension_semantics=("parallel",),
            vmem_limit_bytes=48 * 1024 * 1024,
        ),
        cost_estimate=cost,
    )(l2d, v2d, reduce_mat)

    probs = probs2d.reshape(logits.shape)
    log_prob = logprob2d.reshape(batch_shape)
    return probs, log_prob


if __name__ == "__main__":
    # TODO(synk): the PyTorch forward returns a Distribution object; the kernel
    # materializes its probs (mean) and Independent log_prob instead.
    key = jax.random.PRNGKey(0)
    k1, k2 = jax.random.split(key)

    B, C, H, W = 2, 4, 16, 16          # NCHW logits, num_channels=1 -> event dim = W
    logits = jax.random.normal(k1, (B, C, H, W), dtype=jnp.float32)
    value = (jax.random.uniform(k2, (B, C, H, W)) > 0.5).astype(jnp.float32)

    probs, log_prob = bernoulli_activation(logits, value, num_channels=1)
    jax.block_until_ready((probs, log_prob))

    # Pure-JAX reference check.
    ref_probs = jax.nn.sigmoid(logits)
    ref_lp_elem = value * jax.nn.log_sigmoid(logits) + (1.0 - value) * jax.nn.log_sigmoid(-logits)
    ref_log_prob = jnp.sum(ref_lp_elem, axis=-1)

    assert probs.shape == (B, C, H, W)
    assert log_prob.shape == (B, C, H)
    assert jnp.allclose(probs, ref_probs, atol=1e-5, rtol=1e-5)
    assert jnp.allclose(log_prob, ref_log_prob, atol=1e-3, rtol=1e-5)

    print("KERNEL_OK")
</pallas_src>

<mosaic_0001>
module attributes {stable_mosaic.version = 11 : i64} {
  func.func @_bernoulli_kernel(%arg0: i32, %arg1: memref<8x128xf32, #tpu.memory_space<vmem>>, %arg2: memref<8x128xf32, #tpu.memory_space<vmem>>, %arg3: memref<128x8xf32, #tpu.memory_space<vmem>>, %arg4: memref<8x128xf32, #tpu.memory_space<vmem>>, %arg5: memref<8x8xf32, #tpu.memory_space<vmem>>) attributes {dimension_semantics = [#tpu.dimension_semantics<parallel>], iteration_bounds = array<i64: 2>, scalar_prefetch = 0 : i64, scratch_operands = 0 : i64, tpu.core_type = #tpu.core_type<tc>, window_params = [{transform_indices = @transform_0, window_bounds = array<i64: 8, 128>}, {transform_indices = @transform_1, window_bounds = array<i64: 8, 128>}, {pipeline_mode = #tpu.pipeline_mode<synchronous>, transform_indices = @transform_2, window_bounds = array<i64: 128, 8>}, {transform_indices = @transform_3, window_bounds = array<i64: 8, 128>}, {transform_indices = @transform_4, window_bounds = array<i64: 8, 8>}]} {
    %c0 = arith.constant 0 : index
    %c0_0 = arith.constant 0 : index
    %0 = vector.load %arg1[%c0, %c0_0] : memref<8x128xf32, #tpu.memory_space<vmem>>, vector<8x128xf32>
    %c0_1 = arith.constant 0 : index
    %c0_2 = arith.constant 0 : index
    %1 = vector.load %arg2[%c0_1, %c0_2] : memref<8x128xf32, #tpu.memory_space<vmem>>, vector<8x128xf32>
    %2 = math.absf %0 : vector<8x128xf32>
    %cst = arith.constant 0.000000e+00 : f32
    %3 = vector.broadcast %cst : f32 to vector<8x128xf32>
    %4 = arith.subf %3, %2 : vector<8x128xf32>
    %5 = math.exp %4 : vector<8x128xf32>
    %cst_3 = arith.constant 1.000000e+00 : f32
    %6 = vector.broadcast %cst_3 : f32 to vector<8x128xf32>
    %7 = arith.addf %6, %5 : vector<8x128xf32>
    %cst_4 = arith.constant 1.000000e+00 : f32
    %8 = vector.broadcast %cst_4 : f32 to vector<8x128xf32>
    %9 = arith.divf %8, %7 : vector<8x128xf32>
    %cst_5 = arith.constant 0.000000e+00 : f32
    %10 = vector.broadcast %cst_5 : f32 to vector<8x128xf32>
    %11 = arith.cmpf oge, %0, %10 : vector<8x128xf32>
    %12 = arith.mulf %5, %9 : vector<8x128xf32>
    %13 = arith.select %11, %9, %12 : vector<8x128xi1>, vector<8x128xf32>
    %c0_6 = arith.constant 0 : index
    %c0_7 = arith.constant 0 : index
    %14 = vector.load %arg4[%c0_6, %c0_7] : memref<8x128xf32, #tpu.memory_space<vmem>>, vector<8x128xf32>
    tpu.vector_store %arg4[%c0_6, %c0_7], %13 {strides = array<i32>} : memref<8x128xf32, #tpu.memory_space<vmem>>, vector<8x128xf32>,
    %15 = arith.mulf %1, %0 : vector<8x128xf32>
    %cst_8 = arith.constant 0.000000e+00 : f32
    %16 = vector.broadcast %cst_8 : f32 to vector<8x128xf32>
    %17 = arith.maximumf %0, %16 : vector<8x128xf32>
    %18 = math.log1p %5 : vector<8x128xf32>
    %19 = arith.addf %17, %18 : vector<8x128xf32>
    %20 = arith.subf %15, %19 : vector<8x128xf32>
    %c0_9 = arith.constant 0 : index
    %c0_10 = arith.constant 0 : index
    %21 = vector.load %arg3[%c0_9, %c0_10] : memref<128x8xf32, #tpu.memory_space<vmem>>, vector<128x8xf32>
    %cst_11 = arith.constant dense<0.000000e+00> : vector<8x8xf32>
    %22 = tpu.matmul %20, %21, %cst_11 {dimension_numbers = #tpu.dot_dimension_numbers<[1], [0], [0], [1], [0, 0, 1, 1], [], []>, precision = #tpu.contract_precision<fp32>} : vector<8x128xf32>, vector<128x8xf32>, vector<8x8xf32> -> vector<8x8xf32>
    %c0_12 = arith.constant 0 : index
    %c0_13 = arith.constant 0 : index
    %23 = vector.load %arg5[%c0_12, %c0_13] : memref<8x8xf32, #tpu.memory_space<vmem>>, vector<8x8xf32>
    tpu.vector_store %arg5[%c0_12, %c0_13], %22 {strides = array<i32>} : memref<8x8xf32, #tpu.memory_space<vmem>>, vector<8x8xf32>,
    return
  }
  func.func @transform_0(%arg0: i32) -> (i32, i32) {
    %c0_i32 = arith.constant 0 : i32
    %c0_i32_0 = arith.constant 0 : i32
    return %arg0, %c0_i32 : i32, i32
  }
  func.func @transform_1(%arg0: i32) -> (i32, i32) {
    %c0_i32 = arith.constant 0 : i32
    %c0_i32_0 = arith.constant 0 : i32
    return %arg0, %c0_i32 : i32, i32
  }
  func.func @transform_2(%arg0: i32) -> (i32, i32) {
    %c0_i32 = arith.constant 0 : i32
    %c0_i32_0 = arith.constant 0 : i32
    %c0_i32_1 = arith.constant 0 : i32
    return %c0_i32, %c0_i32_0 : i32, i32
  }
  func.func @transform_3(%arg0: i32) -> (i32, i32) {
    %c0_i32 = arith.constant 0 : i32
    %c0_i32_0 = arith.constant 0 : i32
    return %arg0, %c0_i32 : i32, i32
  }
  func.func @transform_4(%arg0: i32) -> (i32, i32) {
    %c0_i32 = arith.constant 0 : i32
    %c0_i32_0 = arith.constant 0 : i32
    return %arg0, %c0_i32 : i32, i32
  }
}

</mosaic_0001>

<llo_original>
// kernel: tpu_custom_call.1
$region0: #{tpu_custom_call.1}
  #allocation0 [shape = 'u32[]', space=smem, size = 0x4, offset = 0x4, fixed_abs, tag = 'smem constant byte address 0x4 - core index']
  #allocation1 [shape = 'u32[144,128]{1,0:T(1,128)}', space=vmem, size = 0x12000, scoped, tag = 'internal scratch']
  %s0 = inlined_call_operand.vmem [shape: f32[16,128], index: 0, kind: input, shape index: {}]
  %s1 = inlined_call_operand.vmem [shape: f32[16,128], index: 1, kind: input, shape index: {}]
  %s2 = inlined_call_operand.vmem [shape: f32[128,8], index: 2, kind: input, shape index: {}]
  %s3 = inlined_call_operand.hbm [shape: f32[16,128], index: 3, kind: output, shape index: {0}]
  %s4 = inlined_call_operand.vmem [shape: f32[16,8], index: 4, kind: output, shape index: {1}]
  %5 = xla_tuple %s3, %s4
  %s6 = sld [smem:[#allocation0]]
  $region53: #{tpu_custom_call.1} parent=0
    _
  %s8 = ssub.s32 1, %s6
  %s9 = scalar_select 0, %s8, %s6
  $region1: #{tpu_custom_call.1} parent=0
    #allocation2 [shape = 'u8[8192]{0}', space=vmem, size = 0x2000, scoped, tag = 'output window, operand 0']
    #allocation3 [shape = 's32[2]{0}', space=sflag, size = 0x8, scoped, tag = 'scoped memory for tpu_custom_call.1']
    %10 = vsyncpa [#allocation3], 0
    %s11 = scalar_lea.sflag [#allocation3], 1
    %12 = vsyncpa %s11, 0
    loop: start=0, step=1, limit=4
    $region2: #{tpu_custom_call.1} parent=1 // loop_pre_header
      _
    $region3: #{tpu_custom_call.1} parent=1 // loop_header
      %s14 = sphi 0, %s18
      %p15 = scmp.ge.s32.totalorder %s14, 4
      %s24 = sphi 0, %s26
      %s27 = sphi 0, %s24
      %s28 = sphi 0, %s27
      %s44 = sphi 0, %s28
      %s50 = sphi 0, %s52
      %s53 = sphi 0, %s50
      %s54 = sphi 0, %s53
      %s70 = sphi 0, %s54
      %s74 = sphi 0, %s74
      %s76 = sphi 0, %s74
      %s77 = sphi 0, %s76
      %s91 = sphi 0, %s77
      %s97 = sphi 0, %s99
      %s100 = sphi 0, %s97
      %s101 = sphi 0, %s100
      %s117 = sphi 0, %s101
      %s123 = sphi 0, %s125
      %s126 = sphi 0, %s123
      %s127 = sphi 0, %s126
      %s143 = sphi 0, %s127
    $region4: #{tpu_custom_call.1} parent=1 // loop_header_branch
      %17 = sbr.rel (%p15) target = $region8
    $region5: #{tpu_custom_call.1} parent=1 // loop_body
      %s19 = ssub.s32 %s14, 1
      %s20 = ssub.s32 %s14, 2
      %s21 = sadd.s32 %s14, 1
      %s22 = ssub.s32 %s14, %s21
      %p23 = scmp.eq.s32.totalorder %s22, 0
      %s25 = sadd.s32 %s24, 1
      %s26 = scalar_select %p23, %s24, %s25
      %p29 = pneg %p23
      %p30 = scmp.eq.s32.totalorder %s14, 1
      %p31 = por %p29, %p30
      %p32 = scmp.ne.s32.totalorder %s24, %s27
      %p33 = scmp.eq.s32.totalorder %s14, 0
      %p34 = por %p32, %p33
      %p35 = scmp.ne.s32.totalorder %s24, %s27
      %p36 = scmp.eq.s32.totalorder %s19, 1
      %p37 = por %p35, %p36
      %p38 = scmp.ne.s32.totalorder %s27, %s28
      %p39 = scmp.eq.s32.totalorder %s19, 0
      %p40 = por %p38, %p39
      %p41 = scmp.ne.s32.totalorder %s27, %s28
      %p42 = scmp.eq.s32.totalorder %s20, 1
      %p43 = por %p41, %p42
      %p45 = scmp.ne.s32.totalorder %s28, %s44
      %p46 = scmp.eq.s32.totalorder %s20, 0
      %p47 = por %p45, %p46
      %s48 = ssub.s32 %s14, %s21
      %p49 = scmp.eq.s32.totalorder %s48, 0
      %s51 = sadd.s32 %s50, 1
      %s52 = scalar_select %p49, %s50, %s51
      %p55 = pneg %p49
      %p56 = scmp.eq.s32.totalorder %s14, 1
      %p57 = por %p55, %p56
      %p58 = scmp.ne.s32.totalorder %s50, %s53
      %p59 = scmp.eq.s32.totalorder %s14, 0
      %p60 = por %p58, %p59
      %p61 = scmp.ne.s32.totalorder %s50, %s53
      %p62 = scmp.eq.s32.totalorder %s19, 1
      %p63 = por %p61, %p62
      %p64 = scmp.ne.s32.totalorder %s53, %s54
      %p65 = scmp.eq.s32.totalorder %s19, 0
      %p66 = por %p64, %p65
      %p67 = scmp.ne.s32.totalorder %s53, %s54
      %p68 = scmp.eq.s32.totalorder %s20, 1
      %p69 = por %p67, %p68
      %p71 = scmp.ne.s32.totalorder %s54, %s70
      %p72 = scmp.eq.s32.totalorder %s20, 0
      %p73 = por %p71, %p72
      %s75 = sadd.s32 %s74, 1
      %p78 = scmp.eq.s32.totalorder %s14, 1
      %p79 = scmp.ne.s32.totalorder %s74, %s76
      %p80 = scmp.eq.s32.totalorder %s14, 0
      %p81 = por %p79, %p80
      %p82 = scmp.ne.s32.totalorder %s74, %s76
      %p83 = scmp.eq.s32.totalorder %s19, 1
      %p84 = por %p82, %p83
      %p85 = scmp.ne.s32.totalorder %s76, %s77
      %p86 = scmp.eq.s32.totalorder %s19, 0
      %p87 = por %p85, %p86
      %p88 = scmp.ne.s32.totalorder %s76, %s77
      %p89 = scmp.eq.s32.totalorder %s20, 1
      %p90 = por %p88, %p89
      %p92 = scmp.ne.s32.totalorder %s77, %s91
      %p93 = scmp.eq.s32.totalorder %s20, 0
      %p94 = por %p92, %p93
      %s95 = ssub.s32 %s14, %s21
      %p96 = scmp.eq.s32.totalorder %s95, 0
      %s98 = sadd.s32 %s97, 1
      %s99 = scalar_select %p96, %s97, %s98
      %p102 = pneg %p96
      %p103 = scmp.eq.s32.totalorder %s14, 1
      %p104 = por %p102, %p103
      %p105 = scmp.ne.s32.totalorder %s97, %s100
      %p106 = scmp.eq.s32.totalorder %s14, 0
      %p107 = por %p105, %p106
      %p108 = scmp.ne.s32.totalorder %s97, %s100
      %p109 = scmp.eq.s32.totalorder %s19, 1
      %p110 = por %p108, %p109
      %p111 = scmp.ne.s32.totalorder %s100, %s101
      %p112 = scmp.eq.s32.totalorder %s19, 0
      %p113 = por %p111, %p112
      %p114 = scmp.ne.s32.totalorder %s100, %s101
      %p115 = scmp.eq.s32.totalorder %s20, 1
      %p116 = por %p114, %p115
      %p118 = scmp.ne.s32.totalorder %s101, %s117
      %p119 = scmp.eq.s32.totalorder %s20, 0
      %p120 = por %p118, %p119
      %s121 = ssub.s32 %s14, %s21
      %p122 = scmp.eq.s32.totalorder %s121, 0
      %s124 = sadd.s32 %s123, 1
      %s125 = scalar_select %p122, %s123, %s124
      %p128 = pneg %p122
      %p129 = scmp.eq.s32.totalorder %s14, 1
      %p130 = por %p128, %p129
      %p131 = scmp.ne.s32.totalorder %s123, %s126
      %p132 = scmp.eq.s32.totalorder %s14, 0
      %p133 = por %p131, %p132
      %p134 = scmp.ne.s32.totalorder %s123, %s126
      %p135 = scmp.eq.s32.totalorder %s19, 1
      %p136 = por %p134, %p135
      %p137 = scmp.ne.s32.totalorder %s126, %s127
      %p138 = scmp.eq.s32.totalorder %s19, 0
      %p139 = por %p137, %p138
      %p140 = scmp.ne.s32.totalorder %s126, %s127
      %p141 = scmp.eq.s32.totalorder %s20, 1
      %p142 = por %p140, %p141
      %p144 = scmp.ne.s32.totalorder %s127, %s143
      %p145 = scmp.eq.s32.totalorder %s20, 0
      %p146 = por %p144, %p145
      %p147 = scmp.le.s32.totalorder 1, %s14
      %p148 = scmp.lt.s32.totalorder %s14, 3
      %p149 = pnand %p147, %p148
      %p150 = pneg %p149
      // Predicated region
      $region9: #{tpu_custom_call.1} parent=5 // pred_check
        _
      $region10: #{tpu_custom_call.1} parent=5 // pred_check_branch
        %152 = sbr.rel (%p149) target = $region12
      $region11: #{tpu_custom_call.1} parent=5 // pred_region
        %s153 = ssub.s32 %s14, 1
        // Predicated region
        $region13: #{tpu_custom_call.1} parent=11 // pred_check
          %p154 = pneg %p87
        $region14: #{tpu_custom_call.1} parent=11 // pred_check_branch
          %156 = sbr.rel (%p154) target = $region16
        $region15: #{tpu_custom_call.1} parent=11 // pred_region
          _
        $region16: #{tpu_custom_call.1} parent=11 // pred_fallthru
          _
      $region12: #{tpu_custom_call.1} parent=5 // pred_fallthru
        _
      %p157 = scmp.lt.s32.totalorder %s14, 2
      // Predicated region
      $region17: #{tpu_custom_call.1} parent=5 // pred_check
        %p158 = pneg %p157
      $region18: #{tpu_custom_call.1} parent=5 // pred_check_branch
        %160 = sbr.rel (%p158) target = $region20
      $region19: #{tpu_custom_call.1} parent=5 // pred_region
        // Predicated region
        $region21: #{tpu_custom_call.1} parent=19 // pred_check
          %p161 = pneg %p34
        $region22: #{tpu_custom_call.1} parent=19 // pred_check_branch
          %163 = sbr.rel (%p161) target = $region24
        $region23: #{tpu_custom_call.1} parent=19 // pred_region
          %p164 = scmp.lt.s32.totalorder %s14, 1
          %s165 = scalar_select %p164, %s14, 1
          %s166 = smul.addr %s165, 8
          %s167 = scalar_lea.vmem %s0, %s166
        $region24: #{tpu_custom_call.1} parent=19 // pred_fallthru
          _
        // Predicated region
        $region25: #{tpu_custom_call.1} parent=19 // pred_check
          %p168 = pneg %p60
        $region26: #{tpu_custom_call.1} parent=19 // pred_check_branch
          %170 = sbr.rel (%p168) target = $region28
        $region27: #{tpu_custom_call.1} parent=19 // pred_region
          %p171 = scmp.lt.s32.totalorder %s14, 1
          %s172 = scalar_select %p171, %s14, 1
          %s173 = smul.addr %s172, 8
          %s174 = scalar_lea.vmem %s1, %s173
        $region28: #{tpu_custom_call.1} parent=19 // pred_fallthru
          _
      $region20: #{tpu_custom_call.1} parent=5 // pred_fallthru
        _
      %p175 = scmp.le.s32.totalorder 1, %s14
      %p176 = scmp.lt.s32.totalorder %s14, 3
      %p177 = pnand %p175, %p176
      %p178 = pneg %p177
      // Predicated region
      $region29: #{tpu_custom_call.1} parent=5 // pred_check
        _
      $region30: #{tpu_custom_call.1} parent=5 // pred_check_branch
        %180 = sbr.rel (%p177) target = $region32
      $region31: #{tpu_custom_call.1} parent=5 // pred_region
        %s181 = ssub.s32 %s14, 1
        %p182 = scmp.lt.s32.totalorder %s19, 1
        %s183 = scalar_select %p182, %s19, 1
        %s184 = smul.addr %s183, 8
        %s185 = scalar_lea.vmem %s0, %s184
        %p186 = pneg %p40
        %p187 = pneg %p37
        %p188 = scmp.lt.s32.totalorder %s19, 1
        %s189 = scalar_select %p188, %s19, 1
        %s190 = smul.addr %s189, 8
        %s191 = scalar_lea.vmem %s1, %s190
        %p192 = pneg %p66
        %p193 = pneg %p63
        %p194 = pneg %p87
        %p195 = pneg %p84
        %p196 = pneg %p113
        %p197 = pneg %p110
        %s198 = sand.u32 %s100, 1
        %s199 = scalar_lea.sflag [#allocation3], %s198
        %s200 = sand.u32 %s100, 1
        %s201 = smul.addr %s200, 8
        %s202 = scalar_lea.vmem [#allocation2], %s201
        %p203 = pneg %p139
        %p204 = pneg %p136
        %p205 = scmp.lt.s32.totalorder %s19, 1
        %s206 = scalar_select %p205, %s19, 1
        %s207 = smul.addr %s206, 8
        %s208 = scalar_lea.vmem %s4, %s207
        %p209 = scmp.lt.s32.totalorder %s19, 1
        %s210 = scalar_select %p209, %s19, 1
        %s211 = smul.addr %s210, 8
        %s212 = scalar_lea.vmem %s0, %s211
        %p213 = scmp.lt.s32.totalorder %s19, 1
        %s214 = scalar_select %p213, %s19, 1
        %s215 = smul.addr %s214, 8
        %s216 = scalar_lea.vmem %s1, %s215
        %p217 = scmp.lt.s32.totalorder %s19, 1
        %s218 = scalar_select %p217, %s19, 1
        %s219 = smul.addr %s218, 8
        %s220 = scalar_lea.vmem %s4, %s219
        %v221 = vld [vmem:[%s212] sm:$0xff]
        %v222 = vld [vmem:[%s216] sm:$0xff]
        %v223 = vand.u32 2147483647, %v221
        %v224 = vsub.f32 0.0, %v223
        %v225 = vmul.f32 %v224, 1.442695
        %v226 = vpow.pop %v225
        %v227 = vadd.f32 %v226, 1.0
        %v228 = vrcp.pop %v227
        %v229 = vmul.f32 1.0, %v228
        %vm230 = vcmp.ge.f32.partialorder %v221, 0.0
        %v231 = vmul.f32 %v226, %v229
        %v232 = vsel %vm230, %v229, %v231
        %233 = vst [vmem:[%s202] sm:$0xff] %v232
        %v234 = vmul.f32 %v222, %v221
        %v235 = vmax.f32 %v221, 0.0
        %v236 = vadd.f32 %v226, 1.0
        %v237 = vlog2.pop %v236
        %v238 = vmul.f32 %v237, 0.6931472
        %v239 = vmul.f32 -0.5, %v226
        %v240 = vadd.f32 %v239, 1.0
        %v241 = vmul.f32 %v240, %v226
        %v242 = vand.u32 2147483647, %v226
        %vm243 = vcmp.lt.f32.partialorder %v242, 0.0004427343
        %v244 = vsel %vm243, %v241, %v238
        %v245 = vadd.f32 %v235, %v244
        %v246 = vsub.f32 %v234, %v245
        %v247 = vld [vmem:[%s2] sm:$0xff]
        %v248 = vld [vmem:[%s2 + $0x8] sm:$0xff]
        %v249 = vld [vmem:[%s2 + $0x10] sm:$0xff]
        %v250 = vld [vmem:[%s2 + $0x18] sm:$0xff]
        %v251 = vld [vmem:[%s2 + $0x20] sm:$0xff]
        %v252 = vld [vmem:[%s2 + $0x28] sm:$0xff]
        %v253 = vld [vmem:[%s2 + $0x30] sm:$0xff]
        %v254 = vld [vmem:[%s2 + $0x38] sm:$0xff]
        %v255 = vld [vmem:[%s2 + $0x40] sm:$0xff]
        %v256 = vld [vmem:[%s2 + $0x48] sm:$0xff]
        %v257 = vld [vmem:[%s2 + $0x50] sm:$0xff]
        %v258 = vld [vmem:[%s2 + $0x58] sm:$0xff]
        %v259 = vld [vmem:[%s2 + $0x60] sm:$0xff]
        %v260 = vld [vmem:[%s2 + $0x68] sm:$0xff]
        %v261 = vld [vmem:[%s2 + $0x70] sm:$0xff]
        %v262 = vld [vmem:[%s2 + $0x78] sm:$0xff]
        %263 = vmatprep.subr.mxu0 0.0
        %v264 = vand.u32 %v247, 4294901760
        %265 = vmatpush1.msra.mxu0 %v264
        %266 = vmatprep.subr.mxu0 0.0
        %v267 = vand.u32 %v248, 4294901760
        %268 = vmatpush1.msra.mxu0 %v267
        %269 = vmatprep.subr.mxu0 0.0
        %v270 = vand.u32 %v249, 4294901760
        %271 = vmatpush1.msra.mxu0 %v270
        %272 = vmatprep.subr.mxu0 0.0
        %v273 = vand.u32 %v250, 4294901760
        %274 = vmatpush1.msra.mxu0 %v273
        %275 = vmatprep.subr.mxu0 0.0
        %v276 = vand.u32 %v251, 4294901760
        %277 = vmatpush1.msra.mxu0 %v276
        %278 = vmatprep.subr.mxu0 0.0
        %v279 = vand.u32 %v252, 4294901760
        %280 = vmatpush1.msra.mxu0 %v279
        %281 = vmatprep.subr.mxu0 0.0
        %v282 = vand.u32 %v253, 4294901760
        %283 = vmatpush1.msra.mxu0 %v282
        %284 = vmatprep.subr.mxu0 0.0
        %v285 = vand.u32 %v254, 4294901760
        %286 = vmatpush1.msra.mxu0 %v285
        %287 = vmatprep.subr.mxu0 0.0
        %v288 = vand.u32 %v255, 4294901760
        %289 = vmatpush1.msra.mxu0 %v288
        %290 = vmatprep.subr.mxu0 0.0
        %v291 = vand.u32 %v256, 4294901760
        %292 = vmatpush1.msra.mxu0 %v291
        %293 = vmatprep.subr.mxu0 0.0
        %v294 = vand.u32 %v257, 4294901760
        %295 = vmatpush1.msra.mxu0 %v294
        %296 = vmatprep.subr.mxu0 0.0
        %v297 = vand.u32 %v258, 4294901760
        %298 = vmatpush1.msra.mxu0 %v297
        %299 = vmatprep.subr.mxu0 0.0
        %v300 = vand.u32 %v259, 4294901760
        %301 = vmatpush1.msra.mxu0 %v300
        %302 = vmatprep.subr.mxu0 0.0
        %v303 = vand.u32 %v260, 4294901760
        %304 = vmatpush1.msra.mxu0 %v303
        %305 = vmatprep.subr.mxu0 0.0
        %v306 = vand.u32 %v261, 4294901760
        %307 = vmatpush1.msra.mxu0 %v306
        %308 = vmatprep.subr.mxu0 0.0
        %v309 = vand.u32 %v262, 4294901760
        %310 = vmatpush1.msra.mxu0 %v309
        %311 = vmatprep.subr.mxu0 0.0
        %312 = vmatpush1.msra.mxu0 0.0
        %313 = vmatprep.subr.mxu0 0.0
        %314 = vmatpush1.msra.mxu0 0.0
        %315 = vmatprep.subr.mxu0 0.0
        %316 = vmatpush1.msra.mxu0 0.0
        %317 = vmatprep.subr.mxu0 0.0
        %318 = vmatpush1.msra.mxu0 0.0
        %319 = vmatprep.subr.mxu0 0.0
        %320 = vmatpush1.msra.mxu0 0.0
        %321 = vmatprep.subr.mxu0 0.0
        %322 = vmatpush1.msra.mxu0 0.0
        %323 = vmatprep.subr.mxu0 0.0
        %324 = vmatpush1.msra.mxu0 0.0
        %325 = vmatprep.subr.mxu0 0.0
        %326 = vmatpush1.msra.mxu0 0.0
        %327 = vmatprep.subr.mxu0 0.0
        %328 = vmatpush1.msra.mxu0 0.0
        %329 = vmatprep.subr.mxu0 0.0
        %330 = vmatpush1.msra.mxu0 0.0
        %331 = vmatprep.subr.mxu0 0.0
        %332 = vmatpush1.msra.mxu0 0.0
        %333 = vmatprep.subr.mxu0 0.0
        %334 = vmatpush1.msra.mxu0 0.0
        %335 = vmatprep.subr.mxu0 0.0
        %336 = vmatpush1.msra.mxu0 0.0
        %337 = vmatprep.subr.mxu0 0.0
        %338 = vmatpush1.msra.mxu0 0.0
        %339 = vmatprep.subr.mxu0 0.0
        %340 = vmatpush1.msra.mxu0 0.0
        %341 = vmatprep.subr.mxu0 0.0
        %342 = vmatpush1.msra.mxu0 0.0
        %343 = vmatprep.mubr.f32.mxu0 0.0
        %v344 = vand.u32 %v246, 4294901760
        %v345 = vsub.f32 %v246, %v344
        %v346 = vand.u32 %v345, 4294901760
        %v347 = vsub.f32 %v345, %v346
        %v348 = vand.u32 %v347, 4294901760
        %349 = vmatmul.mubr.f32.gmra.mrb[0].mxu0 %v348
        %v350 = vpop.f32.mrb[0].mxu0
        %v351 = vadd.f32 0.0, %v350
        %v352 = vpop.f32.mrb[0].mxu0
        %353 = vdwg.mxu0
        %354 = vmatprep.subr.mxu0 0.0
        %v355 = vand.u32 %v247, 4294901760
        %v356 = vsub.f32 %v247, %v355
        %v357 = vand.u32 %v356, 4294901760
        %v358 = vsub.f32 %v356, %v357
        %v359 = vand.u32 %v358, 4294901760
        %360 = vmatpush1.msra.mxu0 %v359
        %361 = vmatprep.subr.mxu0 0.0
        %v362 = vand.u32 %v248, 4294901760
        %v363 = vsub.f32 %v248, %v362
        %v364 = vand.u32 %v363, 4294901760
        %v365 = vsub.f32 %v363, %v364
        %v366 = vand.u32 %v365, 4294901760
        %367 = vmatpush1.msra.mxu0 %v366
        %368 = vmatprep.subr.mxu0 0.0
        %v369 = vand.u32 %v249, 4294901760
        %v370 = vsub.f32 %v249, %v369
        %v371 = vand.u32 %v370, 4294901760
        %v372 = vsub.f32 %v370, %v371
        %v373 = vand.u32 %v372, 4294901760
        %374 = vmatpush1.msra.mxu0 %v373
        %375 = vmatprep.subr.mxu0 0.0
        %v376 = vand.u32 %v250, 4294901760
        %v377 = vsub.f32 %v250, %v376
        %v378 = vand.u32 %v377, 4294901760
        %v379 = vsub.f32 %v377, %v378
        %v380 = vand.u32 %v379, 4294901760
        %381 = vmatpush1.msra.mxu0 %v380
        %382 = vmatprep.subr.mxu0 0.0
        %v383 = vand.u32 %v251, 4294901760
        %v384 = vsub.f32 %v251, %v383
        %v385 = vand.u32 %v384, 4294901760
        %v386 = vsub.f32 %v384, %v385
        %v387 = vand.u32 %v386, 4294901760
        %388 = vmatpush1.msra.mxu0 %v387
        %389 = vmatprep.subr.mxu0 0.0
        %v390 = vand.u32 %v252, 4294901760
        %v391 = vsub.f32 %v252, %v390
        %v392 = vand.u32 %v391, 4294901760
        %v393 = vsub.f32 %v391, %v392
        %v394 = vand.u32 %v393, 4294901760
        %395 = vmatpush1.msra.mxu0 %v394
        %396 = vmatprep.subr.mxu0 0.0
        %v397 = vand.u32 %v253, 4294901760
        %v398 = vsub.f32 %v253, %v397
        %v399 = vand.u32 %v398, 4294901760
        %v400 = vsub.f32 %v398, %v399
        %v401 = vand.u32 %v400, 4294901760
        %402 = vmatpush1.msra.mxu0 %v401
        %403 = vmatprep.subr.mxu0 0.0
        %v404 = vand.u32 %v254, 4294901760
        %v405 = vsub.f32 %v254, %v404
        %v406 = vand.u32 %v405, 4294901760
        %v407 = vsub.f32 %v405, %v406
        %v408 = vand.u32 %v407, 4294901760
        %409 = vmatpush1.msra.mxu0 %v408
        %410 = vmatprep.subr.mxu0 0.0
        %v411 = vand.u32 %v255, 4294901760
        %v412 = vsub.f32 %v255, %v411
        %v413 = vand.u32 %v412, 4294901760
        %v414 = vsub.f32 %v412, %v413
        %v415 = vand.u32 %v414, 4294901760
        %416 = vmatpush1.msra.mxu0 %v415
        %417 = vmatprep.subr.mxu0 0.0
        %v418 = vand.u32 %v256, 4294901760
        %v419 = vsub.f32 %v256, %v418
        %v420 = vand.u32 %v419, 4294901760
        %v421 = vsub.f32 %v419, %v420
        %v422 = vand.u32 %v421, 4294901760
        %423 = vmatpush1.msra.mxu0 %v422
        %424 = vmatprep.subr.mxu0 0.0
        %v425 = vand.u32 %v257, 4294901760
        %v426 = vsub.f32 %v257, %v425
        %v427 = vand.u32 %v426, 4294901760
        %v428 = vsub.f32 %v426, %v427
        %v429 = vand.u32 %v428, 4294901760
        %430 = vmatpush1.msra.mxu0 %v429
        %431 = vmatprep.subr.mxu0 0.0
        %v432 = vand.u32 %v258, 4294901760
        %v433 = vsub.f32 %v258, %v432
        %v434 = vand.u32 %v433, 4294901760
        %v435 = vsub.f32 %v433, %v434
        %v436 = vand.u32 %v435, 4294901760
        %437 = vmatpush1.msra.mxu0 %v436
        %438 = vmatprep.subr.mxu0 0.0
        %v439 = vand.u32 %v259, 4294901760
        %v440 = vsub.f32 %v259, %v439
        %v441 = vand.u32 %v440, 4294901760
        %v442 = vsub.f32 %v440, %v441
        %v443 = vand.u32 %v442, 4294901760
        %444 = vmatpush1.msra.mxu0 %v443
        %445 = vmatprep.subr.mxu0 0.0
        %v446 = vand.u32 %v260, 4294901760
        %v447 = vsub.f32 %v260, %v446
        %v448 = vand.u32 %v447, 4294901760
        %v449 = vsub.f32 %v447, %v448
        %v450 = vand.u32 %v449, 4294901760
        %451 = vmatpush1.msra.mxu0 %v450
        %452 = vmatprep.subr.mxu0 0.0
        %v453 = vand.u32 %v261, 4294901760
        %v454 = vsub.f32 %v261, %v453
        %v455 = vand.u32 %v454, 4294901760
        %v456 = vsub.f32 %v454, %v455
        %v457 = vand.u32 %v456, 4294901760
        %458 = vmatpush1.msra.mxu0 %v457
        %459 = vmatprep.subr.mxu0 0.0
        %v460 = vand.u32 %v262, 4294901760
        %v461 = vsub.f32 %v262, %v460
        %v462 = vand.u32 %v461, 4294901760
        %v463 = vsub.f32 %v461, %v462
        %v464 = vand.u32 %v463, 4294901760
        %465 = vmatpush1.msra.mxu0 %v464
        %466 = vmatprep.subr.mxu0 0.0
        %467 = vmatpush1.msra.mxu0 0.0
        %468 = vmatprep.subr.mxu0 0.0
        %469 = vmatpush1.msra.mxu0 0.0
        %470 = vmatprep.subr.mxu0 0.0
        %471 = vmatpush1.msra.mxu0 0.0
        %472 = vmatprep.subr.mxu0 0.0
        %473 = vmatpush1.msra.mxu0 0.0
        %474 = vmatprep.subr.mxu0 0.0
        %475 = vmatpush1.msra.mxu0 0.0
        %476 = vmatprep.subr.mxu0 0.0
        %477 = vmatpush1.msra.mxu0 0.0
        %478 = vmatprep.subr.mxu0 0.0
        %479 = vmatpush1.msra.mxu0 0.0
        %480 = vmatprep.subr.mxu0 0.0
        %481 = vmatpush1.msra.mxu0 0.0
        %482 = vmatprep.subr.mxu0 0.0
        %483 = vmatpush1.msra.mxu0 0.0
        %484 = vmatprep.subr.mxu0 0.0
        %485 = vmatpush1.msra.mxu0 0.0
        %486 = vmatprep.subr.mxu0 0.0
        %487 = vmatpush1.msra.mxu0 0.0
        %488 = vmatprep.subr.mxu0 0.0
        %489 = vmatpush1.msra.mxu0 0.0
        %490 = vmatprep.subr.mxu0 0.0
        %491 = vmatpush1.msra.mxu0 0.0
        %492 = vmatprep.subr.mxu0 0.0
        %493 = vmatpush1.msra.mxu0 0.0
        %494 = vmatprep.subr.mxu0 0.0
        %495 = vmatpush1.msra.mxu0 0.0
        %496 = vmatprep.subr.mxu0 0.0
        %497 = vmatpush1.msra.mxu0 0.0
        %498 = vmatprep.mubr.f32.mxu0 0.0
        %v499 = vand.u32 %v246, 4294901760
        %500 = vmatmul.mubr.f32.gmra.mrb[0].mxu0 %v499
        %v501 = vpop.f32.mrb[0].mxu0
        %v502 = vadd.f32 %v351, %v501
        %v503 = vpop.f32.mrb[0].mxu0
        %504 = vdwg.mxu0
        %505 = vmatprep.subr.mxu0 0.0
        %v506 = vand.u32 %v247, 4294901760
        %v507 = vsub.f32 %v247, %v506
        %508 = vmatpush1.msra.mxu0 %v507
        %509 = vmatprep.subr.mxu0 0.0
        %v510 = vand.u32 %v248, 4294901760
        %v511 = vsub.f32 %v248, %v510
        %512 = vmatpush1.msra.mxu0 %v511
        %513 = vmatprep.subr.mxu0 0.0
        %v514 = vand.u32 %v249, 4294901760
        %v515 = vsub.f32 %v249, %v514
        %516 = vmatpush1.msra.mxu0 %v515
        %517 = vmatprep.subr.mxu0 0.0
        %v518 = vand.u32 %v250, 4294901760
        %v519 = vsub.f32 %v250, %v518
        %520 = vmatpush1.msra.mxu0 %v519
        %521 = vmatprep.subr.mxu0 0.0
        %v522 = vand.u32 %v251, 4294901760
        %v523 = vsub.f32 %v251, %v522
        %524 = vmatpush1.msra.mxu0 %v523
        %525 = vmatprep.subr.mxu0 0.0
        %v526 = vand.u32 %v252, 4294901760
        %v527 = vsub.f32 %v252, %v526
        %528 = vmatpush1.msra.mxu0 %v527
        %529 = vmatprep.subr.mxu0 0.0
        %v530 = vand.u32 %v253, 4294901760
        %v531 = vsub.f32 %v253, %v530
        %532 = vmatpush1.msra.mxu0 %v531
        %533 = vmatprep.subr.mxu0 0.0
        %v534 = vand.u32 %v254, 4294901760
        %v535 = vsub.f32 %v254, %v534
        %536 = vmatpush1.msra.mxu0 %v535
        %537 = vmatprep.subr.mxu0 0.0
        %v538 = vand.u32 %v255, 4294901760
        %v539 = vsub.f32 %v255, %v538
        %540 = vmatpush1.msra.mxu0 %v539
        %541 = vmatprep.subr.mxu0 0.0
        %v542 = vand.u32 %v256, 4294901760
        %v543 = vsub.f32 %v256, %v542
        %544 = vmatpush1.msra.mxu0 %v543
        %545 = vmatprep.subr.mxu0 0.0
        %v546 = vand.u32 %v257, 4294901760
        %v547 = vsub.f32 %v257, %v546
        %548 = vmatpush1.msra.mxu0 %v547
        %549 = vmatprep.subr.mxu0 0.0
        %v550 = vand.u32 %v258, 4294901760
        %v551 = vsub.f32 %v258, %v550
        %552 = vmatpush1.msra.mxu0 %v551
        %553 = vmatprep.subr.mxu0 0.0
        %v554 = vand.u32 %v259, 4294901760
        %v555 = vsub.f32 %v259, %v554
        %556 = vmatpush1.msra.mxu0 %v555
        %557 = vmatprep.subr.mxu0 0.0
        %v558 = vand.u32 %v260, 4294901760
        %v559 = vsub.f32 %v260, %v558
        %560 = vmatpush1.msra.mxu0 %v559
        %561 = vmatprep.subr.mxu0 0.0
        %v562 = vand.u32 %v261, 4294901760
        %v563 = vsub.f32 %v261, %v562
        %564 = vmatpush1.msra.mxu0 %v563
        %565 = vmatprep.subr.mxu0 0.0
        %v566 = vand.u32 %v262, 4294901760
        %v567 = vsub.f32 %v262, %v566
        %568 = vmatpush1.msra.mxu0 %v567
        %569 = vmatprep.subr.mxu0 0.0
        %570 = vmatpush1.msra.mxu0 0.0
        %571 = vmatprep.subr.mxu0 0.0
        %572 = vmatpush1.msra.mxu0 0.0
        %573 = vmatprep.subr.mxu0 0.0
        %574 = vmatpush1.msra.mxu0 0.0
        %575 = vmatprep.subr.mxu0 0.0
        %576 = vmatpush1.msra.mxu0 0.0
        %577 = vmatprep.subr.mxu0 0.0
        %578 = vmatpush1.msra.mxu0 0.0
        %579 = vmatprep.subr.mxu0 0.0
        %580 = vmatpush1.msra.mxu0 0.0
        %581 = vmatprep.subr.mxu0 0.0
        %582 = vmatpush1.msra.mxu0 0.0
        %583 = vmatprep.subr.mxu0 0.0
        %584 = vmatpush1.msra.mxu0 0.0
        %585 = vmatprep.subr.mxu0 0.0
        %586 = vmatpush1.msra.mxu0 0.0
        %587 = vmatprep.subr.mxu0 0.0
        %588 = vmatpush1.msra.mxu0 0.0
        %589 = vmatprep.subr.mxu0 0.0
        %590 = vmatpush1.msra.mxu0 0.0
        %591 = vmatprep.subr.mxu0 0.0
        %592 = vmatpush1.msra.mxu0 0.0
        %593 = vmatprep.subr.mxu0 0.0
        %594 = vmatpush1.msra.mxu0 0.0
        %595 = vmatprep.subr.mxu0 0.0
        %596 = vmatpush1.msra.mxu0 0.0
        %597 = vmatprep.subr.mxu0 0.0
        %598 = vmatpush1.msra.mxu0 0.0
        %599 = vmatprep.subr.mxu0 0.0
        %600 = vmatpush1.msra.mxu0 0.0
        %601 = vmatprep.mubr.f32.mxu0 0.0
        %v602 = vand.u32 %v246, 4294901760
        %v603 = vsub.f32 %v246, %v602
        %604 = vmatmul.mubr.f32.gmra.mrb[0].mxu0 %v603
        %v605 = vpop.f32.mrb[0].mxu0
        %v606 = vadd.f32 %v502, %v605
        %v607 = vpop.f32.mrb[0].mxu0
        %608 = vdwg.mxu0
        %609 = vmatprep.subr.mxu0 0.0
        %v610 = vand.u32 %v247, 4294901760
        %611 = vmatpush1.msra.mxu0 %v610
        %612 = vmatprep.subr.mxu0 0.0
        %v613 = vand.u32 %v248, 4294901760
        %614 = vmatpush1.msra.mxu0 %v613
        %615 = vmatprep.subr.mxu0 0.0
        %v616 = vand.u32 %v249, 4294901760
        %617 = vmatpush1.msra.mxu0 %v616
        %618 = vmatprep.subr.mxu0 0.0
        %v619 = vand.u32 %v250, 4294901760
        %620 = vmatpush1.msra.mxu0 %v619
        %621 = vmatprep.subr.mxu0 0.0
        %v622 = vand.u32 %v251, 4294901760
        %623 = vmatpush1.msra.mxu0 %v622
        %624 = vmatprep.subr.mxu0 0.0
        %v625 = vand.u32 %v252, 4294901760
        %626 = vmatpush1.msra.mxu0 %v625
        %627 = vmatprep.subr.mxu0 0.0
        %v628 = vand.u32 %v253, 4294901760
        %629 = vmatpush1.msra.mxu0 %v628
        %630 = vmatprep.subr.mxu0 0.0
        %v631 = vand.u32 %v254, 4294901760
        %632 = vmatpush1.msra.mxu0 %v631
        %633 = vmatprep.subr.mxu0 0.0
        %v634 = vand.u32 %v255, 4294901760
        %635 = vmatpush1.msra.mxu0 %v634
        %636 = vmatprep.subr.mxu0 0.0
        %v637 = vand.u32 %v256, 4294901760
        %638 = vmatpush1.msra.mxu0 %v637
        %639 = vmatprep.subr.mxu0 0.0
        %v640 = vand.u32 %v257, 4294901760
        %641 = vmatpush1.msra.mxu0 %v640
        %642 = vmatprep.subr.mxu0 0.0
        %v643 = vand.u32 %v258, 4294901760
        %644 = vmatpush1.msra.mxu0 %v643
        %645 = vmatprep.subr.mxu0 0.0
        %v646 = vand.u32 %v259, 4294901760
        %647 = vmatpush1.msra.mxu0 %v646
        %648 = vmatprep.subr.mxu0 0.0
        %v649 = vand.u32 %v260, 4294901760
        %650 = vmatpush1.msra.mxu0 %v649
        %651 = vmatprep.subr.mxu0 0.0
        %v652 = vand.u32 %v261, 4294901760
        %653 = vmatpush1.msra.mxu0 %v652
        %654 = vmatprep.subr.mxu0 0.0
        %v655 = vand.u32 %v262, 4294901760
        %656 = vmatpush1.msra.mxu0 %v655
        %657 = vmatprep.subr.mxu0 0.0
        %658 = vmatpush1.msra.mxu0 0.0
        %659 = vmatprep.subr.mxu0 0.0
        %660 = vmatpush1.msra.mxu0 0.0
        %661 = vmatprep.subr.mxu0 0.0
        %662 = vmatpush1.msra.mxu0 0.0
        %663 = vmatprep.subr.mxu0 0.0
        %664 = vmatpush1.msra.mxu0 0.0
        %665 = vmatprep.subr.mxu0 0.0
        %666 = vmatpush1.msra.mxu0 0.0
        %667 = vmatprep.subr.mxu0 0.0
        %668 = vmatpush1.msra.mxu0 0.0
        %669 = vmatprep.subr.mxu0 0.0
        %670 = vmatpush1.msra.mxu0 0.0
        %671 = vmatprep.subr.mxu0 0.0
        %672 = vmatpush1.msra.mxu0 0.0
        %673 = vmatprep.subr.mxu0 0.0
        %674 = vmatpush1.msra.mxu0 0.0
        %675 = vmatprep.subr.mxu0 0.0
        %676 = vmatpush1.msra.mxu0 0.0
        %677 = vmatprep.subr.mxu0 0.0
        %678 = vmatpush1.msra.mxu0 0.0
        %679 = vmatprep.subr.mxu0 0.0
        %680 = vmatpush1.msra.mxu0 0.0
        %681 = vmatprep.subr.mxu0 0.0
        %682 = vmatpush1.msra.mxu0 0.0
        %683 = vmatprep.subr.mxu0 0.0
        %684 = vmatpush1.msra.mxu0 0.0
        %685 = vmatprep.subr.mxu0 0.0
        %686 = vmatpush1.msra.mxu0 0.0
        %687 = vmatprep.subr.mxu0 0.0
        %688 = vmatpush1.msra.mxu0 0.0
        %689 = vmatprep.mubr.f32.mxu0 0.0
        %v690 = vand.u32 %v246, 4294901760
        %v691 = vsub.f32 %v246, %v690
        %v692 = vand.u32 %v691, 4294901760
        %693 = vmatmul.mubr.f32.gmra.mrb[0].mxu0 %v692
        %v694 = vpop.f32.mrb[0].mxu0
        %v695 = vadd.f32 %v606, %v694
        %v696 = vpop.f32.mrb[0].mxu0
        %697 = vdwg.mxu0
        %698 = vmatprep.subr.mxu0 0.0
        %v699 = vand.u32 %v247, 4294901760
        %v700 = vsub.f32 %v247, %v699
        %v701 = vand.u32 %v700, 4294901760
        %702 = vmatpush1.msra.mxu0 %v701
        %703 = vmatprep.subr.mxu0 0.0
        %v704 = vand.u32 %v248, 4294901760
        %v705 = vsub.f32 %v248, %v704
        %v706 = vand.u32 %v705, 4294901760
        %707 = vmatpush1.msra.mxu0 %v706
        %708 = vmatprep.subr.mxu0 0.0
        %v709 = vand.u32 %v249, 4294901760
        %v710 = vsub.f32 %v249, %v709
        %v711 = vand.u32 %v710, 4294901760
        %712 = vmatpush1.msra.mxu0 %v711
        %713 = vmatprep.subr.mxu0 0.0
        %v714 = vand.u32 %v250, 4294901760
        %v715 = vsub.f32 %v250, %v714
        %v716 = vand.u32 %v715, 4294901760
        %717 = vmatpush1.msra.mxu0 %v716
        %718 = vmatprep.subr.mxu0 0.0
        %v719 = vand.u32 %v251, 4294901760
        %v720 = vsub.f32 %v251, %v719
        %v721 = vand.u32 %v720, 4294901760
        %722 = vmatpush1.msra.mxu0 %v721
        %723 = vmatprep.subr.mxu0 0.0
        %v724 = vand.u32 %v252, 4294901760
        %v725 = vsub.f32 %v252, %v724
        %v726 = vand.u32 %v725, 4294901760
        %727 = vmatpush1.msra.mxu0 %v726
        %728 = vmatprep.subr.mxu0 0.0
        %v729 = vand.u32 %v253, 4294901760
        %v730 = vsub.f32 %v253, %v729
        %v731 = vand.u32 %v730, 4294901760
        %732 = vmatpush1.msra.mxu0 %v731
        %733 = vmatprep.subr.mxu0 0.0
        %v734 = vand.u32 %v254, 4294901760
        %v735 = vsub.f32 %v254, %v734
        %v736 = vand.u32 %v735, 4294901760
        %737 = vmatpush1.msra.mxu0 %v736
        %738 = vmatprep.subr.mxu0 0.0
        %v739 = vand.u32 %v255, 4294901760
        %v740 = vsub.f32 %v255, %v739
        %v741 = vand.u32 %v740, 4294901760
        %742 = vmatpush1.msra.mxu0 %v741
        %743 = vmatprep.subr.mxu0 0.0
        %v744 = vand.u32 %v256, 4294901760
        %v745 = vsub.f32 %v256, %v744
        %v746 = vand.u32 %v745, 4294901760
        %747 = vmatpush1.msra.mxu0 %v746
        %748 = vmatprep.subr.mxu0 0.0
        %v749 = vand.u32 %v257, 4294901760
        %v750 = vsub.f32 %v257, %v749
        %v751 = vand.u32 %v750, 4294901760
        %752 = vmatpush1.msra.mxu0 %v751
        %753 = vmatprep.subr.mxu0 0.0
        %v754 = vand.u32 %v258, 4294901760
        %v755 = vsub.f32 %v258, %v754
        %v756 = vand.u32 %v755, 4294901760
        %757 = vmatpush1.msra.mxu0 %v756
        %758 = vmatprep.subr.mxu0 0.0
        %v759 = vand.u32 %v259, 4294901760
        %v760 = vsub.f32 %v259, %v759
        %v761 = vand.u32 %v760, 4294901760
        %762 = vmatpush1.msra.mxu0 %v761
        %763 = vmatprep.subr.mxu0 0.0
        %v764 = vand.u32 %v260, 4294901760
        %v765 = vsub.f32 %v260, %v764
        %v766 = vand.u32 %v765, 4294901760
        %767 = vmatpush1.msra.mxu0 %v766
        %768 = vmatprep.subr.mxu0 0.0
        %v769 = vand.u32 %v261, 4294901760
        %v770 = vsub.f32 %v261, %v769
        %v771 = vand.u32 %v770, 4294901760
        %772 = vmatpush1.msra.mxu0 %v771
        %773 = vmatprep.subr.mxu0 0.0
        %v774 = vand.u32 %v262, 4294901760
        %v775 = vsub.f32 %v262, %v774
        %v776 = vand.u32 %v775, 4294901760
        %777 = vmatpush1.msra.mxu0 %v776
        %778 = vmatprep.subr.mxu0 0.0
        %779 = vmatpush1.msra.mxu0 0.0
        %780 = vmatprep.subr.mxu0 0.0
        %781 = vmatpush1.msra.mxu0 0.0
        %782 = vmatprep.subr.mxu0 0.0
        %783 = vmatpush1.msra.mxu0 0.0
        %784 = vmatprep.subr.mxu0 0.0
        %785 = vmatpush1.msra.mxu0 0.0
        %786 = vmatprep.subr.mxu0 0.0
        %787 = vmatpush1.msra.mxu0 0.0
        %788 = vmatprep.subr.mxu0 0.0
        %789 = vmatpush1.msra.mxu0 0.0
        %790 = vmatprep.subr.mxu0 0.0
        %791 = vmatpush1.msra.mxu0 0.0
        %792 = vmatprep.subr.mxu0 0.0
        %793 = vmatpush1.msra.mxu0 0.0
        %794 = vmatprep.subr.mxu0 0.0
        %795 = vmatpush1.msra.mxu0 0.0
        %796 = vmatprep.subr.mxu0 0.0
        %797 = vmatpush1.msra.mxu0 0.0
        %798 = vmatprep.subr.mxu0 0.0
        %799 = vmatpush1.msra.mxu0 0.0
        %800 = vmatprep.subr.mxu0 0.0
        %801 = vmatpush1.msra.mxu0 0.0
        %802 = vmatprep.subr.mxu0 0.0
        %803 = vmatpush1.msra.mxu0 0.0
        %804 = vmatprep.subr.mxu0 0.0
        %805 = vmatpush1.msra.mxu0 0.0
        %806 = vmatprep.subr.mxu0 0.0
        %807 = vmatpush1.msra.mxu0 0.0
        %808 = vmatprep.subr.mxu0 0.0
        %809 = vmatpush1.msra.mxu0 0.0
        %810 = vmatprep.mubr.f32.mxu0 0.0
        %v811 = vand.u32 %v246, 4294901760
        %812 = vmatmul.mubr.f32.gmra.mrb[0].mxu0 %v811
        %v813 = vpop.f32.mrb[0].mxu0
        %v814 = vadd.f32 %v695, %v813
        %v815 = vpop.f32.mrb[0].mxu0
        %816 = vdwg.mxu0
        %817 = vmatprep.subr.mxu0 0.0
        %v818 = vand.u32 %v247, 4294901760
        %819 = vmatpush1.msra.mxu0 %v818
        %820 = vmatprep.subr.mxu0 0.0
        %v821 = vand.u32 %v248, 4294901760
        %822 = vmatpush1.msra.mxu0 %v821
        %823 = vmatprep.subr.mxu0 0.0
        %v824 = vand.u32 %v249, 4294901760
        %825 = vmatpush1.msra.mxu0 %v824
        %826 = vmatprep.subr.mxu0 0.0
        %v827 = vand.u32 %v250, 4294901760
        %828 = vmatpush1.msra.mxu0 %v827
        %829 = vmatprep.subr.mxu0 0.0
        %v830 = vand.u32 %v251, 4294901760
        %831 = vmatpush1.msra.mxu0 %v830
        %832 = vmatprep.subr.mxu0 0.0
        %v833 = vand.u32 %v252, 4294901760
        %834 = vmatpush1.msra.mxu0 %v833
        %835 = vmatprep.subr.mxu0 0.0
        %v836 = vand.u32 %v253, 4294901760
        %837 = vmatpush1.msra.mxu0 %v836
        %838 = vmatprep.subr.mxu0 0.0
        %v839 = vand.u32 %v254, 4294901760
        %840 = vmatpush1.msra.mxu0 %v839
        %841 = vmatprep.subr.mxu0 0.0
        %v842 = vand.u32 %v255, 4294901760
        %843 = vmatpush1.msra.mxu0 %v842
        %844 = vmatprep.subr.mxu0 0.0
        %v845 = vand.u32 %v256, 4294901760
        %846 = vmatpush1.msra.mxu0 %v845
        %847 = vmatprep.subr.mxu0 0.0
        %v848 = vand.u32 %v257, 4294901760
        %849 = vmatpush1.msra.mxu0 %v848
        %850 = vmatprep.subr.mxu0 0.0
        %v851 = vand.u32 %v258, 4294901760
        %852 = vmatpush1.msra.mxu0 %v851
        %853 = vmatprep.subr.mxu0 0.0
        %v854 = vand.u32 %v259, 4294901760
        %855 = vmatpush1.msra.mxu0 %v854
        %856 = vmatprep.subr.mxu0 0.0
        %v857 = vand.u32 %v260, 4294901760
        %858 = vmatpush1.msra.mxu0 %v857
        %859 = vmatprep.subr.mxu0 0.0
        %v860 = vand.u32 %v261, 4294901760
        %861 = vmatpush1.msra.mxu0 %v860
        %862 = vmatprep.subr.mxu0 0.0
        %v863 = vand.u32 %v262, 4294901760
        %864 = vmatpush1.msra.mxu0 %v863
        %865 = vmatprep.subr.mxu0 0.0
        %866 = vmatpush1.msra.mxu0 0.0
        %867 = vmatprep.subr.mxu0 0.0
        %868 = vmatpush1.msra.mxu0 0.0
        %869 = vmatprep.subr.mxu0 0.0
        %870 = vmatpush1.msra.mxu0 0.0
        %871 = vmatprep.subr.mxu0 0.0
        %872 = vmatpush1.msra.mxu0 0.0
        %873 = vmatprep.subr.mxu0 0.0
        %874 = vmatpush1.msra.mxu0 0.0
        %875 = vmatprep.subr.mxu0 0.0
        %876 = vmatpush1.msra.mxu0 0.0
        %877 = vmatprep.subr.mxu0 0.0
        %878 = vmatpush1.msra.mxu0 0.0
        %879 = vmatprep.subr.mxu0 0.0
        %880 = vmatpush1.msra.mxu0 0.0
        %881 = vmatprep.subr.mxu0 0.0
        %882 = vmatpush1.msra.mxu0 0.0
        %883 = vmatprep.subr.mxu0 0.0
        %884 = vmatpush1.msra.mxu0 0.0
        %885 = vmatprep.subr.mxu0 0.0
        %886 = vmatpush1.msra.mxu0 0.0
        %887 = vmatprep.subr.mxu0 0.0
        %888 = vmatpush1.msra.mxu0 0.0
        %889 = vmatprep.subr.mxu0 0.0
        %890 = vmatpush1.msra.mxu0 0.0
        %891 = vmatprep.subr.mxu0 0.0
        %892 = vmatpush1.msra.mxu0 0.0
        %893 = vmatprep.subr.mxu0 0.0
        %894 = vmatpush1.msra.mxu0 0.0
        %895 = vmatprep.subr.mxu0 0.0
        %896 = vmatpush1.msra.mxu0 0.0
        %897 = vmatprep.mubr.f32.mxu0 0.0
        %v898 = vand.u32 %v246, 4294901760
        %899 = vmatmul.mubr.f32.gmra.mrb[0].mxu0 %v898
        %v900 = vpop.f32.mrb[0].mxu0
        %v901 = vadd.f32 %v814, %v900
        %v902 = vpop.f32.mrb[0].mxu0
        %903 = vdwg.mxu0
        %vm904 = vcmask 64512
        %905 = vst.msk [vmem:[%s220] sm:$0xff] %vm904, %v901
        %s906 = sand.u32 %s100, 1
        %s907 = scalar_lea.sflag [#allocation3], %s906
        %s908 = sand.u32 %s100, 1
        %s909 = smul.addr %s908, 8
        %s910 = scalar_lea.vmem [#allocation2], %s909
        %p911 = scmp.lt.s32.totalorder %s19, 1
        %s912 = scalar_select %p911, %s19, 1
        %s913 = smul.addr %s912, 8
        %s914 = scalar_lea.vmem %s4, %s913
        // Predicated region
        $region33: #{tpu_custom_call.1} parent=31 // pred_check
          %p915 = pneg %p110
        $region34: #{tpu_custom_call.1} parent=31 // pred_check_branch
          %917 = sbr.rel (%p915) target = $region36
        $region35: #{tpu_custom_call.1} parent=31 // pred_region
          %s919 = ssub.s32 128, 128
          %920 = vsyncadd %s907, %s919
          %s921 = smul.addr %s19, 128
          %s922 = scalar_lea.hbm %s3, %s921
          %s924 = sshll.u32 %s910, 4
          %s925 = int_to_ptr.vmem [resolvable:$true] %s924
          %927 = dma.vmem_to_hbm [thread:$0]  %s925, 128, %s922, %s907
        $region36: #{tpu_custom_call.1} parent=31 // pred_fallthru
          _
        // Predicated region
        $region37: #{tpu_custom_call.1} parent=31 // pred_check
          %p928 = pneg %p136
        $region38: #{tpu_custom_call.1} parent=31 // pred_check_branch
          %930 = sbr.rel (%p928) target = $region40
        $region39: #{tpu_custom_call.1} parent=31 // pred_region
          _
        $region40: #{tpu_custom_call.1} parent=31 // pred_fallthru
          _
      $region32: #{tpu_custom_call.1} parent=5 // pred_fallthru
        _
      %p931 = scmp.le.s32.totalorder 2, %s14
      // Predicated region
      $region41: #{tpu_custom_call.1} parent=5 // pred_check
        %p932 = pneg %p931
      $region42: #{tpu_custom_call.1} parent=5 // pred_check_branch
        %934 = sbr.rel (%p932) target = $region44
      $region43: #{tpu_custom_call.1} parent=5 // pred_region
        %s935 = ssub.s32 %s14, 2
        // Predicated region
        $region45: #{tpu_custom_call.1} parent=43 // pred_check
          %p936 = pneg %p116
        $region46: #{tpu_custom_call.1} parent=43 // pred_check_branch
          %938 = sbr.rel (%p936) target = $region48
        $region47: #{tpu_custom_call.1} parent=43 // pred_region
          %s939 = sand.u32 %s101, 1
          %s940 = scalar_lea.sflag [#allocation3], %s939
          %s941 = sand.u32 %s101, 1
          %s942 = smul.addr %s941, 8
          %s943 = scalar_lea.vmem [#allocation2], %s942
          %944 = dma.done %s940, 128
        $region48: #{tpu_custom_call.1} parent=43 // pred_fallthru
          _
        // Predicated region
        $region49: #{tpu_custom_call.1} parent=43 // pred_check
          %p945 = pneg %p142
        $region50: #{tpu_custom_call.1} parent=43 // pred_check_branch
          %947 = sbr.rel (%p945) target = $region52
        $region51: #{tpu_custom_call.1} parent=43 // pred_region
          %p948 = scmp.lt.s32.totalorder %s20, 1
          %s949 = scalar_select %p948, %s20, 1
          %s950 = smul.addr %s949, 8
          %s951 = scalar_lea.vmem %s4, %s950
        $region52: #{tpu_custom_call.1} parent=43 // pred_fallthru
          _
      $region44: #{tpu_custom_call.1} parent=5 // pred_fallthru
        _
    $region6: #{tpu_custom_call.1} parent=1 // loop_footer
      %s18 = sadd.s32 1, %s14
    $region7: #{tpu_custom_call.1} parent=1 // loop_footer_branch
      %13 = sbr.rel target = $region3
    $region8: #{tpu_custom_call.1} parent=1 // loop_exit
      _
    %952 = vsyncpa [#allocation3], 1
    %s953 = scalar_lea.sflag [#allocation3], 1
    %954 = vsyncpa %s953, 1

</llo_original>
